<compile_context>
chip_gen: v6e
topology: v6e:2x2x1
jax: 0.10.0
libtpu: 0.0.40
codegen_flags: <defaults>
</compile_context>

<pallas_src>
import jax
import jax.numpy as jnp
import numpy as np
from jax.experimental import pallas as pl
from jax.experimental.pallas import tpu as pltpu

_LANE = 128
_SUBLANE = 8
_NEG_BIG = -1e30  # exp(-1e30) == 0.0 in f32; marks padded rules as zero-strength


def _round_up(x, m):
    return ((x + m - 1) // m) * m


def anfis_kernel(x_ref, a_t_ref, b_t_ref, cconst_ref, wc_t_ref, bc_ref,
                 ow_t_ref, ob_ref, out_ref):
    x = x_ref[...]                                                # (TN, D)

    # Gaussian exponent via the matmul reformulation (all operands pre-signed /
    # pre-transposed in the wrapper):
    #   expo[n, r] = sum_d -(x[n,d]-c[r,d])^2 * A[r,d]
    expo = (jnp.dot(x * x, a_t_ref[...], preferred_element_type=jnp.float32)
            + jnp.dot(x, b_t_ref[...], preferred_element_type=jnp.float32)
            + cconst_ref[...])                                    # (TN, R_pad)
    strengths = jnp.exp(expo)                                     # padded rules -> 0

    ssum = jnp.sum(strengths, axis=1, keepdims=True)              # (TN, 1)
    # EUP reciprocal + multiply instead of a broadcast divide.
    # (approx=True is cheaper still, but exceeds the 1e-5 correctness tolerance.)
    inv = pl.reciprocal(ssum + 1e-8, approx=False)
    norm = strengths * inv                                        # (TN, R_pad)

    # weighted_inputs = X @ coeffs[:, :-1].T + coeffs[:, -1]
    weighted = (jnp.dot(x, wc_t_ref[...], preferred_element_type=jnp.float32)
                + bc_ref[...])                                    # (TN, R_pad)
    rule_out = norm * weighted                                    # (TN, R_pad)

    # output_layer: rule_out @ W.T + b   (W.T pre-transposed, zero-padded)
    out_ref[...] = (jnp.dot(rule_out, ow_t_ref[...],
                            preferred_element_type=jnp.float32)
                    + ob_ref[...]).astype(out_ref.dtype)          # (TN, C_pad)


def anfis_forward(x, centers, sigmas, coeff_w, coeff_b, out_w, out_b, *, tn=256):
    N, D = x.shape
    R = centers.shape[0]
    C = out_w.shape[0]
    f32 = jnp.float32

    # Lane-dense padding of rules / classes.
    R_pad = max(_LANE, _round_up(R, _LANE))
    C_pad = max(_LANE, _round_up(C, _LANE))

    # Batch tile: sublane-aligned, clamped to the (padded) batch.
    tn = min(tn, _round_up(N, _SUBLANE))
    N_pad = _round_up(N, tn)

    xp = jnp.zeros((N_pad, D), f32).at[:N].set(x.astype(f32))

    # ---- constant per-call precomputation (hoisted out of the serial grid loop) ----
    A = 1.0 / (2.0 * sigmas.astype(f32) ** 2)                     # (R, D)
    a_t = jnp.zeros((D, R_pad), f32).at[:, :R].set((-A).T)         # (D, R_pad)
    b_t = jnp.zeros((D, R_pad), f32).at[:, :R].set(
        (2.0 * centers.astype(f32) * A).T)                         # (D, R_pad)
    cconst = jnp.full((1, R_pad), _NEG_BIG, f32).at[0, :R].set(
        -jnp.sum(centers.astype(f32) ** 2 * A, axis=1))            # (1, R_pad)

    wc_t = jnp.zeros((D, R_pad), f32).at[:, :R].set(coeff_w.astype(f32).T)
    bc = jnp.zeros((1, R_pad), f32).at[:, :R].set(coeff_b.astype(f32))
    ow_t = jnp.zeros((R_pad, C_pad), f32).at[:R, :C].set(out_w.astype(f32).T)
    ob = jnp.zeros((1, C_pad), f32).at[:, :C].set(out_b.astype(f32))

    # Explicit VMEM budget: double-buffered x/out tiles + resident params +
    # lane-dense (TN, R_pad) intermediates, with headroom. Capped well below
    # v7x physical VMEM (64 MiB/TC).
    est = 4 * (2 * tn * D + 2 * tn * C_pad
               + 3 * D * R_pad + 2 * R_pad + R_pad * C_pad + C_pad
               + 6 * tn * R_pad)
    vmem_limit = int(min(max(2 * est + (4 << 20), 16 << 20), 48 << 20))

    out_pad = pl.pallas_call(
        anfis_kernel,
        out_shape=jax.ShapeDtypeStruct((N_pad, C_pad), f32),
        grid=(N_pad // tn,),
        in_specs=[
            pl.BlockSpec((tn, D), lambda i: (i, 0)),        # X tile
            pl.BlockSpec((D, R_pad), lambda i: (0, 0)),     # (-A).T
            pl.BlockSpec((D, R_pad), lambda i: (0, 0)),     # (2 c A).T
            pl.BlockSpec((1, R_pad), lambda i: (0, 0)),     # -sum c^2 A (padded -1e30)
            pl.BlockSpec((D, R_pad), lambda i: (0, 0)),     # coeff_w.T
            pl.BlockSpec((1, R_pad), lambda i: (0, 0)),     # coeff_b
            pl.BlockSpec((R_pad, C_pad), lambda i: (0, 0)), # out_w.T
            pl.BlockSpec((1, C_pad), lambda i: (0, 0)),     # out_b
        ],
        out_specs=pl.BlockSpec((tn, C_pad), lambda i: (i, 0)),
        compiler_params=pltpu.CompilerParams(
            dimension_semantics=("parallel",),
            vmem_limit_bytes=vmem_limit),
    )(xp, a_t, b_t, cconst, wc_t, bc, ow_t, ob)

    return out_pad[:N, :C]


def anfis_reference(x, centers, sigmas, coeff_w, coeff_b, out_w, out_b):
    # Plain-JAX reference mirroring the PyTorch forward exactly.
    memb = jnp.exp(-((x[:, None, :] - centers[None]) ** 2)
                   / (2.0 * sigmas[None] ** 2))               # (N, R, D)
    strengths = jnp.prod(memb, axis=2)                        # (N, R)
    ssum = jnp.sum(strengths, axis=1, keepdims=True)          # (N, 1)
    norm = strengths / (ssum + 1e-8)
    weighted = x @ coeff_w.T + coeff_b                        # (N, R)
    rule_out = norm * weighted
    return rule_out @ out_w.T + out_b                         # (N, C)


if __name__ == "__main__":
    # Small, module-consistent shapes: batch=16, input_dim=4, num_rules=8, num_classes=3
    N, D, R, C = 16, 4, 8, 3

    key = jax.random.PRNGKey(0)
    kx, kc, ks, kw, kb, kow, kob = jax.random.split(key, 7)

    x = jax.random.normal(kx, (N, D), dtype=jnp.float32)

    # Gaussian membership parameters (one membership_class(input_dim) per rule).
    centers = jax.random.normal(kc, (R, D), dtype=jnp.float32)
    sigmas = jax.random.uniform(ks, (R, D), minval=0.5, maxval=1.5,
                                dtype=jnp.float32)

    # NOTE: the PyTorch module initializes self.coeffs to zeros; we use small
    # deterministic random values so the kernel result is non-trivial.
    coeff_w = 0.1 * jax.random.normal(kw, (R, D), dtype=jnp.float32)
    coeff_b = 0.1 * jax.random.normal(kb, (1, R), dtype=jnp.float32)

    # nn.Linear(num_rules, num_classes) params (deterministic random init).
    bound = 1.0 / np.sqrt(R)
    out_w = jax.random.uniform(kow, (C, R), minval=-bound, maxval=bound,
                               dtype=jnp.float32)
    out_b = jax.random.uniform(kob, (1, C), minval=-bound, maxval=bound,
                               dtype=jnp.float32)

    out = anfis_forward(x, centers, sigmas, coeff_w, coeff_b, out_w, out_b)
    out = jax.block_until_ready(out)

    ref = anfis_reference(x, centers, sigmas, coeff_w, coeff_b, out_w, out_b)
    np.testing.assert_allclose(np.asarray(out), np.asarray(ref),
                               rtol=1e-5, atol=1e-5)

    print("KERNEL_OK")
</pallas_src>

<mosaic_0001>
module attributes {stable_mosaic.version = 11 : i64} {
  func.func @anfis_kernel(%arg0: i32, %arg1: memref<16x4xf32, #tpu.memory_space<vmem>>, %arg2: memref<4x128xf32, #tpu.memory_space<vmem>>, %arg3: memref<4x128xf32, #tpu.memory_space<vmem>>, %arg4: memref<1x128xf32, #tpu.memory_space<vmem>>, %arg5: memref<4x128xf32, #tpu.memory_space<vmem>>, %arg6: memref<1x128xf32, #tpu.memory_space<vmem>>, %arg7: memref<128x128xf32, #tpu.memory_space<vmem>>, %arg8: memref<1x128xf32, #tpu.memory_space<vmem>>, %arg9: memref<16x128xf32, #tpu.memory_space<vmem>>) attributes {dimension_semantics = [#tpu.dimension_semantics<parallel>], iteration_bounds = array<i64: 1>, scalar_prefetch = 0 : i64, scratch_operands = 0 : i64, tpu.core_type = #tpu.core_type<tc>, window_params = [{transform_indices = @transform_0, window_bounds = array<i64: 16, 4>}, {pipeline_mode = #tpu.pipeline_mode<synchronous>, transform_indices = @transform_1, window_bounds = array<i64: 4, 128>}, {pipeline_mode = #tpu.pipeline_mode<synchronous>, transform_indices = @transform_2, window_bounds = array<i64: 4, 128>}, {pipeline_mode = #tpu.pipeline_mode<synchronous>, transform_indices = @transform_3, window_bounds = array<i64: 1, 128>}, {pipeline_mode = #tpu.pipeline_mode<synchronous>, transform_indices = @transform_4, window_bounds = array<i64: 4, 128>}, {pipeline_mode = #tpu.pipeline_mode<synchronous>, transform_indices = @transform_5, window_bounds = array<i64: 1, 128>}, {pipeline_mode = #tpu.pipeline_mode<synchronous>, transform_indices = @transform_6, window_bounds = array<i64: 128, 128>}, {pipeline_mode = #tpu.pipeline_mode<synchronous>, transform_indices = @transform_7, window_bounds = array<i64: 1, 128>}, {transform_indices = @transform_8, window_bounds = array<i64: 16, 128>}]} {
    %c0 = arith.constant 0 : index
    %c0_0 = arith.constant 0 : index
    %0 = vector.load %arg1[%c0, %c0_0] : memref<16x4xf32, #tpu.memory_space<vmem>>, vector<16x4xf32>
    %1 = arith.mulf %0, %0 : vector<16x4xf32>
    %c0_1 = arith.constant 0 : index
    %c0_2 = arith.constant 0 : index
    %2 = vector.load %arg2[%c0_1, %c0_2] : memref<4x128xf32, #tpu.memory_space<vmem>>, vector<4x128xf32>
    %cst = arith.constant dense<0.000000e+00> : vector<16x128xf32>
    %3 = tpu.matmul %1, %2, %cst {dimension_numbers = #tpu.dot_dimension_numbers<[1], [0], [0], [1], [0, 0, 1, 1], [], []>} : vector<16x4xf32>, vector<4x128xf32>, vector<16x128xf32> -> vector<16x128xf32>
    %c0_3 = arith.constant 0 : index
    %c0_4 = arith.constant 0 : index
    %4 = vector.load %arg3[%c0_3, %c0_4] : memref<4x128xf32, #tpu.memory_space<vmem>>, vector<4x128xf32>
    %cst_5 = arith.constant dense<0.000000e+00> : vector<16x128xf32>
    %5 = tpu.matmul %0, %4, %cst_5 {dimension_numbers = #tpu.dot_dimension_numbers<[1], [0], [0], [1], [0, 0, 1, 1], [], []>} : vector<16x4xf32>, vector<4x128xf32>, vector<16x128xf32> -> vector<16x128xf32>
    %6 = arith.addf %3, %5 : vector<16x128xf32>
    %c0_6 = arith.constant 0 : index
    %c0_7 = arith.constant 0 : index
    %7 = vector.load %arg4[%c0_6, %c0_7] : memref<1x128xf32, #tpu.memory_space<vmem>>, vector<1x128xf32>
    %8 = vector.broadcast %7 : vector<1x128xf32> to vector<16x128xf32>
    %9 = arith.addf %6, %8 : vector<16x128xf32>
    %10 = math.exp %9 : vector<16x128xf32>
    %cst_8 = arith.constant dense<0.000000e+00> : vector<16xf32>
    %11 = vector.multi_reduction <add>, %10, %cst_8 [1] : vector<16x128xf32> to vector<16xf32>
    %12 = vector.shape_cast %11 : vector<16xf32> to vector<16x1xf32>
    %cst_9 = arith.constant 9.99999993E-9 : f32
    %13 = vector.broadcast %cst_9 : f32 to vector<16x1xf32>
    %14 = arith.addf %12, %13 : vector<16x1xf32>
    %15 = tpu.reciprocal %14 : vector<16x1xf32> -> vector<16x1xf32>
    %16 = vector.broadcast %15 : vector<16x1xf32> to vector<16x128xf32>
    %17 = arith.mulf %10, %16 : vector<16x128xf32>
    %c0_10 = arith.constant 0 : index
    %c0_11 = arith.constant 0 : index
    %18 = vector.load %arg5[%c0_10, %c0_11] : memref<4x128xf32, #tpu.memory_space<vmem>>, vector<4x128xf32>
    %cst_12 = arith.constant dense<0.000000e+00> : vector<16x128xf32>
    %19 = tpu.matmul %0, %18, %cst_12 {dimension_numbers = #tpu.dot_dimension_numbers<[1], [0], [0], [1], [0, 0, 1, 1], [], []>} : vector<16x4xf32>, vector<4x128xf32>, vector<16x128xf32> -> vector<16x128xf32>
    %c0_13 = arith.constant 0 : index
    %c0_14 = arith.constant 0 : index
    %20 = vector.load %arg6[%c0_13, %c0_14] : memref<1x128xf32, #tpu.memory_space<vmem>>, vector<1x128xf32>
    %21 = vector.broadcast %20 : vector<1x128xf32> to vector<16x128xf32>
    %22 = arith.addf %19, %21 : vector<16x128xf32>
    %23 = arith.mulf %17, %22 : vector<16x128xf32>
    %c0_15 = arith.constant 0 : index
    %c0_16 = arith.constant 0 : index
    %24 = vector.load %arg7[%c0_15, %c0_16] : memref<128x128xf32, #tpu.memory_space<vmem>>, vector<128x128xf32>
    %cst_17 = arith.constant dense<0.000000e+00> : vector<16x128xf32>
    %25 = tpu.matmul %23, %24, %cst_17 {dimension_numbers = #tpu.dot_dimension_numbers<[1], [0], [0], [1], [0, 0, 1, 1], [], []>} : vector<16x128xf32>, vector<128x128xf32>, vector<16x128xf32> -> vector<16x128xf32>
    %c0_18 = arith.constant 0 : index
    %c0_19 = arith.constant 0 : index
    %26 = vector.load %arg8[%c0_18, %c0_19] : memref<1x128xf32, #tpu.memory_space<vmem>>, vector<1x128xf32>
    %27 = vector.broadcast %26 : vector<1x128xf32> to vector<16x128xf32>
    %28 = arith.addf %25, %27 : vector<16x128xf32>
    %c0_20 = arith.constant 0 : index
    %c0_21 = arith.constant 0 : index
    %29 = vector.load %arg9[%c0_20, %c0_21] : memref<16x128xf32, #tpu.memory_space<vmem>>, vector<16x128xf32>
    tpu.vector_store %arg9[%c0_20, %c0_21], %28 {strides = array<i32>} : memref<16x128xf32, #tpu.memory_space<vmem>>, vector<16x128xf32>,
    return
  }
  func.func @transform_0(%arg0: i32) -> (i32, i32) {
    %c0_i32 = arith.constant 0 : i32
    %c0_i32_0 = arith.constant 0 : i32
    return %arg0, %c0_i32 : i32, i32
  }
  func.func @transform_1(%arg0: i32) -> (i32, i32) {
    %c0_i32 = arith.constant 0 : i32
    %c0_i32_0 = arith.constant 0 : i32
    %c0_i32_1 = arith.constant 0 : i32
    return %c0_i32, %c0_i32_0 : i32, i32
  }
  func.func @transform_2(%arg0: i32) -> (i32, i32) {
    %c0_i32 = arith.constant 0 : i32
    %c0_i32_0 = arith.constant 0 : i32
    %c0_i32_1 = arith.constant 0 : i32
    return %c0_i32, %c0_i32_0 : i32, i32
  }
  func.func @transform_3(%arg0: i32) -> (i32, i32) {
    %c0_i32 = arith.constant 0 : i32
    %c0_i32_0 = arith.constant 0 : i32
    %c0_i32_1 = arith.constant 0 : i32
    return %c0_i32, %c0_i32_0 : i32, i32
  }
  func.func @transform_4(%arg0: i32) -> (i32, i32) {
    %c0_i32 = arith.constant 0 : i32
    %c0_i32_0 = arith.constant 0 : i32
    %c0_i32_1 = arith.constant 0 : i32
    return %c0_i32, %c0_i32_0 : i32, i32
  }
  func.func @transform_5(%arg0: i32) -> (i32, i32) {
    %c0_i32 = arith.constant 0 : i32
    %c0_i32_0 = arith.constant 0 : i32
    %c0_i32_1 = arith.constant 0 : i32
    return %c0_i32, %c0_i32_0 : i32, i32
  }
  func.func @transform_6(%arg0: i32) -> (i32, i32) {
    %c0_i32 = arith.constant 0 : i32
    %c0_i32_0 = arith.constant 0 : i32
    %c0_i32_1 = arith.constant 0 : i32
    return %c0_i32, %c0_i32_0 : i32, i32
  }
  func.func @transform_7(%arg0: i32) -> (i32, i32) {
    %c0_i32 = arith.constant 0 : i32
    %c0_i32_0 = arith.constant 0 : i32
    %c0_i32_1 = arith.constant 0 : i32
    return %c0_i32, %c0_i32_0 : i32, i32
  }
  func.func @transform_8(%arg0: i32) -> (i32, i32) {
    %c0_i32 = arith.constant 0 : i32
    %c0_i32_0 = arith.constant 0 : i32
    return %arg0, %c0_i32 : i32, i32
  }
}

</mosaic_0001>

<llo_original>
// kernel: tpu_custom_call.1
$region0: #{tpu_custom_call.1}
  #allocation0 [shape = 'u32[]', space=smem, size = 0x4, offset = 0x4, fixed_abs, tag = 'smem constant byte address 0x4 - core index']
  #allocation1 [shape = 'u32[144,128]{1,0:T(1,128)}', space=vmem, size = 0x12000, scoped, tag = 'internal scratch']
  %s0 = inlined_call_operand.vmem [shape: f32[16,4], index: 0, kind: input, shape index: {}]
  %s1 = inlined_call_operand.vmem [shape: f32[4,128], index: 1, kind: input, shape index: {}]
  %s2 = inlined_call_operand.vmem [shape: f32[4,128], index: 2, kind: input, shape index: {}]
  %s3 = inlined_call_operand.vmem [shape: f32[1,128], index: 3, kind: input, shape index: {}]
  %s4 = inlined_call_operand.vmem [shape: f32[4,128], index: 4, kind: input, shape index: {}]
  %s5 = inlined_call_operand.vmem [shape: f32[1,128], index: 5, kind: input, shape index: {}]
  %s6 = inlined_call_operand.hbm [shape: f32[128,128], index: 6, kind: input, shape index: {}]
  %s7 = inlined_call_operand.vmem [shape: f32[1,128], index: 7, kind: input, shape index: {}]
  %s8 = inlined_call_operand.hbm [shape: f32[16,128], index: 8, kind: output, shape index: {}]
  %s9 = sld [smem:[#allocation0]]
  $region46: #{tpu_custom_call.1} parent=0
    _
  %s11 = ssub.s32 1, %s9
  %s12 = scalar_select 0, %s11, %s9
  $region1: #{tpu_custom_call.1} parent=0
    #allocation2 [shape = 'u8[65536]{0}', space=vmem, size = 0x10000, scoped, tag = 'input window, operand 6, single buffered']
    #allocation3 [shape = 's32[1]{0}', space=sflag, size = 0x4, scoped, tag = 'scoped memory for tpu_custom_call.1']
    #allocation4 [shape = 's32[1]{0}', space=sflag, size = 0x4, scoped, tag = 'scoped memory for tpu_custom_call.1']
    #allocation5 [shape = 'u8[8192]{0}', space=vmem, size = 0x2000, scoped, tag = 'output window, operand 0, single buffered']
    %13 = vsyncpa [#allocation3], 0
    %14 = vsyncpa [#allocation4], 0
    // Predicated region
    $region2: #{tpu_custom_call.1} parent=1 // pred_check
      _
    $region3: #{tpu_custom_call.1} parent=1 // pred_check_branch
      %16 = sbr.rel (0) target = $region5
    $region4: #{tpu_custom_call.1} parent=1 // pred_region
      _
    $region5: #{tpu_custom_call.1} parent=1 // pred_fallthru
      _
    // Predicated region
    $region6: #{tpu_custom_call.1} parent=1 // pred_check
      _
    $region7: #{tpu_custom_call.1} parent=1 // pred_check_branch
      %18 = sbr.rel (0) target = $region9
    $region8: #{tpu_custom_call.1} parent=1 // pred_region
      _
    $region9: #{tpu_custom_call.1} parent=1 // pred_fallthru
      _
    // Predicated region
    $region10: #{tpu_custom_call.1} parent=1 // pred_check
      _
    $region11: #{tpu_custom_call.1} parent=1 // pred_check_branch
      %20 = sbr.rel (0) target = $region13
    $region12: #{tpu_custom_call.1} parent=1 // pred_region
      _
    $region13: #{tpu_custom_call.1} parent=1 // pred_fallthru
      _
    // Predicated region
    $region14: #{tpu_custom_call.1} parent=1 // pred_check
      _
    $region15: #{tpu_custom_call.1} parent=1 // pred_check_branch
      %22 = sbr.rel (0) target = $region17
    $region16: #{tpu_custom_call.1} parent=1 // pred_region
      _
    $region17: #{tpu_custom_call.1} parent=1 // pred_fallthru
      _
    // Predicated region
    $region18: #{tpu_custom_call.1} parent=1 // pred_check
      _
    $region19: #{tpu_custom_call.1} parent=1 // pred_check_branch
      %24 = sbr.rel (0) target = $region21
    $region20: #{tpu_custom_call.1} parent=1 // pred_region
      _
    $region21: #{tpu_custom_call.1} parent=1 // pred_fallthru
      _
    // Predicated region
    $region22: #{tpu_custom_call.1} parent=1 // pred_check
      _
    $region23: #{tpu_custom_call.1} parent=1 // pred_check_branch
      %26 = sbr.rel (0) target = $region25
    $region24: #{tpu_custom_call.1} parent=1 // pred_region
      _
    $region25: #{tpu_custom_call.1} parent=1 // pred_fallthru
      _
    // Predicated region
    $region26: #{tpu_custom_call.1} parent=1 // pred_check
      _
    $region27: #{tpu_custom_call.1} parent=1 // pred_check_branch
      %28 = sbr.rel (0) target = $region29
    $region28: #{tpu_custom_call.1} parent=1 // pred_region
      %s30 = ssub.s32 2048, 2048
      %31 = vsyncadd [#allocation3], %s30
      %s32 = sshll.u32 [#allocation2], 4
      %s33 = int_to_ptr.vmem [resolvable:$true] %s32
      %38 = dma.hbm_to_vmem [thread:$0]  %s6, 2048, %s33, [#allocation3], 128, 128, 8
    $region29: #{tpu_custom_call.1} parent=1 // pred_fallthru
      _
    // Predicated region
    $region30: #{tpu_custom_call.1} parent=1 // pred_check
      _
    $region31: #{tpu_custom_call.1} parent=1 // pred_check_branch
      %40 = sbr.rel (0) target = $region33
    $region32: #{tpu_custom_call.1} parent=1 // pred_region
      _
    $region33: #{tpu_custom_call.1} parent=1 // pred_fallthru
      _
    // Predicated region
    $region34: #{tpu_custom_call.1} parent=1 // pred_check
      _
    $region35: #{tpu_custom_call.1} parent=1 // pred_check_branch
      %42 = sbr.rel (0) target = $region37
    $region36: #{tpu_custom_call.1} parent=1 // pred_region
      %43 = dma.done [#allocation3], 2048
    $region37: #{tpu_custom_call.1} parent=1 // pred_fallthru
      _
    %v44 = vld [vmem:[%s0] sm:$0xff]
    %v45 = vld [vmem:[%s0 + $0x8] sm:$0xff]
    %v46 = vmul.f32 %v44, %v44
    %v47 = vmul.f32 %v45, %v45
    %v48 = vld [vmem:[%s1] sm:$0xf]
    %v49 = vld [vmem:[%s2] sm:$0xf]
    %vm50 = vcmask 31744
    %v52 = vsel %vm50, %v44, 0
    %v55 = vsel %vm50, %v45, 0
    %vm57 = vcmask 1043456
    %v59 = vsel %vm57, %v49, 0
    %61 = vmatprep.subr.mxu0 0.0
    %62 = vmatpush1.msra.mxu0 0.0
    %63 = vmatprep.subr.mxu0 0.0
    %64 = vmatpush1.msra.mxu0 0.0
    %65 = vmatprep.subr.mxu0 0.0
    %66 = vmatpush1.msra.mxu0 0.0
    %67 = vmatprep.subr.mxu0 0.0
    %68 = vmatpush1.msra.mxu0 0.0
    %69 = vmatprep.subr.mxu0 0.0
    %70 = vmatpush1.msra.mxu0 0.0
    %71 = vmatprep.subr.mxu0 0.0
    %72 = vmatpush1.msra.mxu0 0.0
    %73 = vmatprep.subr.mxu0 0.0
    %74 = vmatpush1.msra.mxu0 0.0
    %75 = vmatprep.subr.mxu0 0.0
    %76 = vmatpush1.msra.mxu0 0.0
    %77 = vmatprep.subr.mxu0 0.0
    %78 = vmatpush1.msra.mxu0 0.0
    %79 = vmatprep.subr.mxu0 0.0
    %80 = vmatpush1.msra.mxu0 0.0
    %81 = vmatprep.subr.mxu0 0.0
    %82 = vmatpush1.msra.mxu0 0.0
    %83 = vmatprep.subr.mxu0 0.0
    %84 = vmatpush1.msra.mxu0 0.0
    %85 = vmatprep.subr.mxu0 0.0
    %86 = vmatpush1.msra.mxu0 0.0
    %87 = vmatprep.subr.mxu0 0.0
    %88 = vmatpush1.msra.mxu0 0.0
    %89 = vmatprep.subr.mxu0 0.0
    %90 = vmatpush1.msra.mxu0 0.0
    %91 = vmatprep.subr.mxu0 0.0
    %92 = vmatpush1.msra.mxu0 %v59
    %93 = vmatprep.subr.mxu0 0.0
    %94 = vmatpush2.msra.mxu0 0.0
    %95 = vmatprep.subr.mxu0 0.0
    %96 = vmatpush2.msra.mxu0 0.0
    %97 = vmatprep.subr.mxu0 0.0
    %98 = vmatpush2.msra.mxu0 0.0
    %99 = vmatprep.subr.mxu0 0.0
    %100 = vmatpush2.msra.mxu0 0.0
    %101 = vmatprep.subr.mxu0 0.0
    %102 = vmatpush2.msra.mxu0 0.0
    %103 = vmatprep.subr.mxu0 0.0
    %104 = vmatpush2.msra.mxu0 0.0
    %105 = vmatprep.subr.mxu0 0.0
    %106 = vmatpush2.msra.mxu0 0.0
    %107 = vmatprep.subr.mxu0 0.0
    %108 = vmatpush2.msra.mxu0 0.0
    %109 = vmatprep.subr.mxu0 0.0
    %110 = vmatpush2.msra.mxu0 0.0
    %111 = vmatprep.subr.mxu0 0.0
    %112 = vmatpush2.msra.mxu0 0.0
    %113 = vmatprep.subr.mxu0 0.0
    %114 = vmatpush2.msra.mxu0 0.0
    %115 = vmatprep.subr.mxu0 0.0
    %116 = vmatpush2.msra.mxu0 0.0
    %117 = vmatprep.subr.mxu0 0.0
    %118 = vmatpush2.msra.mxu0 0.0
    %119 = vmatprep.subr.mxu0 0.0
    %120 = vmatpush2.msra.mxu0 0.0
    %121 = vmatprep.subr.mxu0 0.0
    %122 = vmatpush2.msra.mxu0 0.0
    %123 = vmatprep.subr.mxu0 0.0
    %124 = vmatpush2.msra.mxu0 0.0
    %125 = vmatprep.mubr.f32.mxu0 0.0
    %126 = vmatmul.mubr.f32.gmra.mxu0 %v52
    %v127 = vpop.f32.mrf.mxu0
    %v128 = vadd.f32 0.0, %v127
    %v129 = vpop.f32.mrf.mxu0
    %130 = vmatprep.mubr.f32.mxu0 0.0
    %131 = vmatmul.mubr.f32.gmra.mxu0 %v55
    %v132 = vpop.f32.mrf.mxu0
    %v133 = vadd.f32 0.0, %v132
    %v134 = vpop.f32.mrf.mxu0
    %135 = vdwg.mxu0
    %v137 = vsel %vm50, %v46, 0
    %v140 = vsel %vm50, %v47, 0
    %v143 = vsel %vm57, %v48, 0
    %145 = vmatprep.subr.mxu0 0.0
    %146 = vmatpush1.msra.mxu0 0.0
    %147 = vmatprep.subr.mxu0 0.0
    %148 = vmatpush1.msra.mxu0 0.0
    %149 = vmatprep.subr.mxu0 0.0
    %150 = vmatpush1.msra.mxu0 0.0
    %151 = vmatprep.subr.mxu0 0.0
    %152 = vmatpush1.msra.mxu0 0.0
    %153 = vmatprep.subr.mxu0 0.0
    %154 = vmatpush1.msra.mxu0 0.0
    %155 = vmatprep.subr.mxu0 0.0
    %156 = vmatpush1.msra.mxu0 0.0
    %157 = vmatprep.subr.mxu0 0.0
    %158 = vmatpush1.msra.mxu0 0.0
    %159 = vmatprep.subr.mxu0 0.0
    %160 = vmatpush1.msra.mxu0 0.0
    %161 = vmatprep.subr.mxu0 0.0
    %162 = vmatpush1.msra.mxu0 0.0
    %163 = vmatprep.subr.mxu0 0.0
    %164 = vmatpush1.msra.mxu0 0.0
    %165 = vmatprep.subr.mxu0 0.0
    %166 = vmatpush1.msra.mxu0 0.0
    %167 = vmatprep.subr.mxu0 0.0
    %168 = vmatpush1.msra.mxu0 0.0
    %169 = vmatprep.subr.mxu0 0.0
    %170 = vmatpush1.msra.mxu0 0.0
    %171 = vmatprep.subr.mxu0 0.0
    %172 = vmatpush1.msra.mxu0 0.0
    %173 = vmatprep.subr.mxu0 0.0
    %174 = vmatpush1.msra.mxu0 0.0
    %175 = vmatprep.subr.mxu0 0.0
    %176 = vmatpush1.msra.mxu0 %v143
    %177 = vmatprep.subr.mxu0 0.0
    %178 = vmatpush2.msra.mxu0 0.0
    %179 = vmatprep.subr.mxu0 0.0
    %180 = vmatpush2.msra.mxu0 0.0
    %181 = vmatprep.subr.mxu0 0.0
    %182 = vmatpush2.msra.mxu0 0.0
    %183 = vmatprep.subr.mxu0 0.0
    %184 = vmatpush2.msra.mxu0 0.0
    %185 = vmatprep.subr.mxu0 0.0
    %186 = vmatpush2.msra.mxu0 0.0
    %187 = vmatprep.subr.mxu0 0.0
    %188 = vmatpush2.msra.mxu0 0.0
    %189 = vmatprep.subr.mxu0 0.0
    %190 = vmatpush2.msra.mxu0 0.0
    %191 = vmatprep.subr.mxu0 0.0
    %192 = vmatpush2.msra.mxu0 0.0
    %193 = vmatprep.subr.mxu0 0.0
    %194 = vmatpush2.msra.mxu0 0.0
    %195 = vmatprep.subr.mxu0 0.0
    %196 = vmatpush2.msra.mxu0 0.0
    %197 = vmatprep.subr.mxu0 0.0
    %198 = vmatpush2.msra.mxu0 0.0
    %199 = vmatprep.subr.mxu0 0.0
    %200 = vmatpush2.msra.mxu0 0.0
    %201 = vmatprep.subr.mxu0 0.0
    %202 = vmatpush2.msra.mxu0 0.0
    %203 = vmatprep.subr.mxu0 0.0
    %204 = vmatpush2.msra.mxu0 0.0
    %205 = vmatprep.subr.mxu0 0.0
    %206 = vmatpush2.msra.mxu0 0.0
    %207 = vmatprep.subr.mxu0 0.0
    %208 = vmatpush2.msra.mxu0 0.0
    %209 = vmatprep.mubr.f32.mxu0 0.0
    %210 = vmatmul.mubr.f32.gmra.mxu0 %v137
    %v211 = vpop.f32.mrf.mxu0
    %v212 = vadd.f32 %v128, %v211
    %v213 = vpop.f32.mrf.mxu0
    %214 = vmatprep.mubr.f32.mxu0 0.0
    %215 = vmatmul.mubr.f32.gmra.mxu0 %v140
    %v216 = vpop.f32.mrf.mxu0
    %v217 = vadd.f32 %v133, %v216
    %v218 = vpop.f32.mrf.mxu0
    %219 = vdwg.mxu0
    %v220 = vld [vmem:[%s3] sm:$0x1]
    %v222 = vlaneseq
    %v223 = vshrl.u32 %v222, 7
    %v224 = vsub.s32 0, %v223
    %v225 = vrot.slane %v220, %v224
    %v227 = vadd.f32 %v212, %v225
    %v228 = vadd.f32 %v217, %v225
    %v229 = vmul.f32 %v227, 1.442695
    %v230 = vpow.pop %v229
    %v231 = vmul.f32 %v228, 1.442695
    %v232 = vpow.pop %v231
    %233 = vadd.xlane.f32.xlu0 %v230
    %v234 = vpop.xlane.xlu0 %233
    %235 = vadd.xlane.f32.xlu0 %v232
    %v236 = vpop.xlane.xlu0 %235
    %v237 = vadd.f32 %v234, 1e-08
    %v238 = vadd.f32 %v236, 1e-08
    %v239 = vrcp.pop %v237
    %v240 = vrcp.pop %v238
    %v241 = vmul.f32 %v230, %v239
    %v242 = vmul.f32 %v232, %v240
    %v243 = vld [vmem:[%s4] sm:$0xf]
    %v244 = vld [vmem:[%s5] sm:$0x1]
    %v246 = vlaneseq
    %v247 = vshrl.u32 %v246, 7
    %v248 = vsub.s32 0, %v247
    %v249 = vrot.slane %v244, %v248
    %v252 = vsel %vm57, %v243, 0
    %254 = vmatprep.subr.mxu0 0.0
    %255 = vmatpush1.msra.mxu0 0.0
    %256 = vmatprep.subr.mxu0 0.0
    %257 = vmatpush1.msra.mxu0 0.0
    %258 = vmatprep.subr.mxu0 0.0
    %259 = vmatpush1.msra.mxu0 0.0
    %260 = vmatprep.subr.mxu0 0.0
    %261 = vmatpush1.msra.mxu0 0.0
    %262 = vmatprep.subr.mxu0 0.0
    %263 = vmatpush1.msra.mxu0 0.0
    %264 = vmatprep.subr.mxu0 0.0
    %265 = vmatpush1.msra.mxu0 0.0
    %266 = vmatprep.subr.mxu0 0.0
    %267 = vmatpush1.msra.mxu0 0.0
    %268 = vmatprep.subr.mxu0 0.0
    %269 = vmatpush1.msra.mxu0 0.0
    %270 = vmatprep.subr.mxu0 0.0
    %271 = vmatpush1.msra.mxu0 0.0
    %272 = vmatprep.subr.mxu0 0.0
    %273 = vmatpush1.msra.mxu0 0.0
    %274 = vmatprep.subr.mxu0 0.0
    %275 = vmatpush1.msra.mxu0 0.0
    %276 = vmatprep.subr.mxu0 0.0
    %277 = vmatpush1.msra.mxu0 0.0
    %278 = vmatprep.subr.mxu0 0.0
    %279 = vmatpush1.msra.mxu0 0.0
    %280 = vmatprep.subr.mxu0 0.0
    %281 = vmatpush1.msra.mxu0 0.0
    %282 = vmatprep.subr.mxu0 0.0
    %283 = vmatpush1.msra.mxu0 0.0
    %284 = vmatprep.subr.mxu0 0.0
    %285 = vmatpush1.msra.mxu0 %v252
    %286 = vmatprep.subr.mxu0 0.0
    %287 = vmatpush2.msra.mxu0 0.0
    %288 = vmatprep.subr.mxu0 0.0
    %289 = vmatpush2.msra.mxu0 0.0
    %290 = vmatprep.subr.mxu0 0.0
    %291 = vmatpush2.msra.mxu0 0.0
    %292 = vmatprep.subr.mxu0 0.0
    %293 = vmatpush2.msra.mxu0 0.0
    %294 = vmatprep.subr.mxu0 0.0
    %295 = vmatpush2.msra.mxu0 0.0
    %296 = vmatprep.subr.mxu0 0.0
    %297 = vmatpush2.msra.mxu0 0.0
    %298 = vmatprep.subr.mxu0 0.0
    %299 = vmatpush2.msra.mxu0 0.0
    %300 = vmatprep.subr.mxu0 0.0
    %301 = vmatpush2.msra.mxu0 0.0
    %302 = vmatprep.subr.mxu0 0.0
    %303 = vmatpush2.msra.mxu0 0.0
    %304 = vmatprep.subr.mxu0 0.0
    %305 = vmatpush2.msra.mxu0 0.0
    %306 = vmatprep.subr.mxu0 0.0
    %307 = vmatpush2.msra.mxu0 0.0
    %308 = vmatprep.subr.mxu0 0.0
    %309 = vmatpush2.msra.mxu0 0.0
    %310 = vmatprep.subr.mxu0 0.0
    %311 = vmatpush2.msra.mxu0 0.0
    %312 = vmatprep.subr.mxu0 0.0
    %313 = vmatpush2.msra.mxu0 0.0
    %314 = vmatprep.subr.mxu0 0.0
    %315 = vmatpush2.msra.mxu0 0.0
    %316 = vmatprep.subr.mxu0 0.0
    %317 = vmatpush2.msra.mxu0 0.0
    %318 = vmatprep.mubr.f32.mxu0 0.0
    %319 = vmatmul.mubr.f32.gmra.mxu0 %v52
    %v320 = vpop.f32.mrf.mxu0
    %v321 = vadd.f32 %v249, %v320
    %v322 = vpop.f32.mrf.mxu0
    %323 = vmatprep.mubr.f32.mxu0 0.0
    %324 = vmatmul.mubr.f32.gmra.mxu0 %v55
    %v325 = vpop.f32.mrf.mxu0
    %v326 = vadd.f32 %v249, %v325
    %v327 = vpop.f32.mrf.mxu0
    %328 = vdwg.mxu0
    %v329 = vmul.f32 %v241, %v321
    %v330 = vmul.f32 %v242, %v326
    %v331 = vld [vmem:[#allocation2] sm:$0xff]
    %v332 = vld [vmem:[#allocation2 + $0x8] sm:$0xff]
    %v333 = vld [vmem:[#allocation2 + $0x10] sm:$0xff]
    %v334 = vld [vmem:[#allocation2 + $0x18] sm:$0xff]
    %v335 = vld [vmem:[#allocation2 + $0x20] sm:$0xff]
    %v336 = vld [vmem:[#allocation2 + $0x28] sm:$0xff]
    %v337 = vld [vmem:[#allocation2 + $0x30] sm:$0xff]
    %v338 = vld [vmem:[#allocation2 + $0x38] sm:$0xff]
    %v339 = vld [vmem:[#allocation2 + $0x40] sm:$0xff]
    %v340 = vld [vmem:[#allocation2 + $0x48] sm:$0xff]
    %v341 = vld [vmem:[#allocation2 + $0x50] sm:$0xff]
    %v342 = vld [vmem:[#allocation2 + $0x58] sm:$0xff]
    %v343 = vld [vmem:[#allocation2 + $0x60] sm:$0xff]
    %v344 = vld [vmem:[#allocation2 + $0x68] sm:$0xff]
    %v345 = vld [vmem:[#allocation2 + $0x70] sm:$0xff]
    %v346 = vld [vmem:[#allocation2 + $0x78] sm:$0xff]
    %v347 = vld [vmem:[%s7] sm:$0x1]
    %v349 = vlaneseq
    %v350 = vshrl.u32 %v349, 7
    %v351 = vsub.s32 0, %v350
    %v352 = vrot.slane %v347, %v351
    %354 = vmatprep.subr.mxu0 0.0
    %355 = vmatpush1.msra.mxu0 %v346
    %356 = vmatprep.subr.mxu0 0.0
    %357 = vmatpush1.msra.mxu0 %v345
    %358 = vmatprep.subr.mxu0 0.0
    %359 = vmatpush1.msra.mxu0 %v344
    %360 = vmatprep.subr.mxu0 0.0
    %361 = vmatpush1.msra.mxu0 %v343
    %362 = vmatprep.subr.mxu0 0.0
    %363 = vmatpush1.msra.mxu0 %v342
    %364 = vmatprep.subr.mxu0 0.0
    %365 = vmatpush1.msra.mxu0 %v341
    %366 = vmatprep.subr.mxu0 0.0
    %367 = vmatpush1.msra.mxu0 %v340
    %368 = vmatprep.subr.mxu0 0.0
    %369 = vmatpush1.msra.mxu0 %v339
    %370 = vmatprep.subr.mxu0 0.0
    %371 = vmatpush1.msra.mxu0 %v338
    %372 = vmatprep.subr.mxu0 0.0
    %373 = vmatpush1.msra.mxu0 %v337
    %374 = vmatprep.subr.mxu0 0.0
    %375 = vmatpush1.msra.mxu0 %v336
    %376 = vmatprep.subr.mxu0 0.0
    %377 = vmatpush1.msra.mxu0 %v335
    %378 = vmatprep.subr.mxu0 0.0
    %379 = vmatpush1.msra.mxu0 %v334
    %380 = vmatprep.subr.mxu0 0.0
    %381 = vmatpush1.msra.mxu0 %v333
    %382 = vmatprep.subr.mxu0 0.0
    %383 = vmatpush1.msra.mxu0 %v332
    %384 = vmatprep.subr.mxu0 0.0
    %385 = vmatpush1.msra.mxu0 %v331
    %386 = vmatprep.subr.mxu0 0.0
    %387 = vmatpush2.msra.mxu0 0.0
    %388 = vmatprep.subr.mxu0 0.0
    %389 = vmatpush2.msra.mxu0 0.0
    %390 = vmatprep.subr.mxu0 0.0
    %391 = vmatpush2.msra.mxu0 0.0
    %392 = vmatprep.subr.mxu0 0.0
    %393 = vmatpush2.msra.mxu0 0.0
    %394 = vmatprep.subr.mxu0 0.0
    %395 = vmatpush2.msra.mxu0 0.0
    %396 = vmatprep.subr.mxu0 0.0
    %397 = vmatpush2.msra.mxu0 0.0
    %398 = vmatprep.subr.mxu0 0.0
    %399 = vmatpush2.msra.mxu0 0.0
    %400 = vmatprep.subr.mxu0 0.0
    %401 = vmatpush2.msra.mxu0 0.0
    %402 = vmatprep.subr.mxu0 0.0
    %403 = vmatpush2.msra.mxu0 0.0
    %404 = vmatprep.subr.mxu0 0.0
    %405 = vmatpush2.msra.mxu0 0.0
    %406 = vmatprep.subr.mxu0 0.0
    %407 = vmatpush2.msra.mxu0 0.0
    %408 = vmatprep.subr.mxu0 0.0
    %409 = vmatpush2.msra.mxu0 0.0
    %410 = vmatprep.subr.mxu0 0.0
    %411 = vmatpush2.msra.mxu0 0.0
    %412 = vmatprep.subr.mxu0 0.0
    %413 = vmatpush2.msra.mxu0 0.0
    %414 = vmatprep.subr.mxu0 0.0
    %415 = vmatpush2.msra.mxu0 0.0
    %416 = vmatprep.subr.mxu0 0.0
    %417 = vmatpush2.msra.mxu0 0.0
    %418 = vmatprep.mubr.f32.mxu0 0.0
    %419 = vmatmul.mubr.f32.gmra.mxu0 %v329
    %v420 = vpop.f32.mrf.mxu0
    %v421 = vadd.f32 %v352, %v420
    %v422 = vpop.f32.mrf.mxu0
    %423 = vmatprep.mubr.f32.mxu0 0.0
    %424 = vmatmul.mubr.f32.gmra.mxu0 %v330
    %v425 = vpop.f32.mrf.mxu0
    %v426 = vadd.f32 %v352, %v425
    %v427 = vpop.f32.mrf.mxu0
    %428 = vdwg.mxu0
    %429 = vst [vmem:[#allocation5] sm:$0xff] %v421
    %430 = vst [vmem:[#allocation5 + $0x8] sm:$0xff] %v426
    // Predicated region
    $region38: #{tpu_custom_call.1} parent=1 // pred_check
      _
    $region39: #{tpu_custom_call.1} parent=1 // pred_check_branch
      %432 = sbr.rel (0) target = $region41
    $region40: #{tpu_custom_call.1} parent=1 // pred_region
      %s434 = ssub.s32 256, 256
      %435 = vsyncadd [#allocation4], %s434
      %s436 = sshll.u32 [#allocation5], 4
      %s437 = int_to_ptr.vmem [resolvable:$true] %s436
      %442 = dma.vmem_to_hbm [thread:$0]  %s437, 256, %s8, [#allocation4], 128, 128, 8
    $region41: #{tpu_custom_call.1} parent=1 // pred_fallthru
      _
    // Predicated region
    $region42: #{tpu_custom_call.1} parent=1 // pred_check
      _
    $region43: #{tpu_custom_call.1} parent=1 // pred_check_branch
      %444 = sbr.rel (0) target = $region45
    $region44: #{tpu_custom_call.1} parent=1 // pred_region
      %445 = dma.done [#allocation4], 256
    $region45: #{tpu_custom_call.1} parent=1 // pred_fallthru
      _
    %446 = vsyncpa [#allocation3], 1
    %447 = vsyncpa [#allocation4], 1

</llo_original>
